<compile_context>
chip_gen: v6e
topology: v6e:2x2x1
jax: 0.10.0
libtpu: 0.0.40
codegen_flags: <defaults>
</compile_context>

<pallas_src>
import functools

import jax
import jax.numpy as jnp
from jax.experimental import pallas as pl
from jax.experimental.pallas import tpu as pltpu

_LANE = 128


def _dice_kernel(x_ref, t_ref, inter_ref, denom_ref, *,
                 block_rows: int, steps_per_slice: int,
                 rows: int, needs_mask: bool):
    k = pl.program_id(1)

    # Cast to f32 inside the kernel (inputs may be bf16 / narrow dtypes).
    x = x_ref[...].astype(jnp.float32)
    t = t_ref[...].astype(jnp.float32)

    # sigmoid via a single EUP op (tanh) instead of exp + reciprocal: halves
    # EUP pressure on v5e, neutral on v6e/v7x.  sigmoid(-1e30) -> exactly 0,
    # which the ragged-lane padding in the wrapper relies on.
    s = 0.5 * (jnp.tanh(0.5 * x) + 1.0)

    st = s * t        # intersection terms
    spt = s + t       # denominator terms (sum(s) + sum(t) fused)

    if needs_mask:
        # Row mask built from the *logical* block index: zeroes garbage rows of
        # a partial last block and any clamped duplicate block of an uneven
        # slice split.  (Lane masking is unnecessary: padded lanes already
        # contribute exactly zero by value.)
        c = pl.program_id(0)
        row0 = (c * steps_per_slice + k) * block_rows
        row_g = row0 + jax.lax.broadcasted_iota(jnp.int32, (block_rows, 1), 0)
        valid = row_g < rows
        st = jnp.where(valid, st, 0.0)
        spt = jnp.where(valid, spt, 0.0)

    # Fold the (block_rows, 128) tile down to one (8, 128) vreg-slab per sum.
    # Two-stage reduction keeps the dependent-add chain short (~block_rows/64
    # + 7 instead of block_rows/8 - 1) with 8 independent vreg chains of ILP.
    if block_rows % 64 == 0 and block_rows >= 64:
        inter_mid = jnp.sum(st.reshape(-1, 64, _LANE), axis=0)    # (64, 128)
        denom_mid = jnp.sum(spt.reshape(-1, 64, _LANE), axis=0)
        inter_p = jnp.sum(inter_mid.reshape(8, 8, _LANE), axis=0)  # (8, 128)
        denom_p = jnp.sum(denom_mid.reshape(8, 8, _LANE), axis=0)
    else:
        inter_p = jnp.sum(st.reshape(-1, 8, _LANE), axis=0)
        denom_p = jnp.sum(spt.reshape(-1, 8, _LANE), axis=0)

    @pl.when(k == 0)
    def _():
        inter_ref[...] = jnp.zeros_like(inter_ref)
        denom_ref[...] = jnp.zeros_like(denom_ref)

    inter_ref[...] += inter_p
    denom_ref[...] += denom_p


def dice_loss(inputs: jax.Array, targets: jax.Array, smooth: float = 1.0,
              block_rows: int = 4096, num_slices: int = 1) -> jax.Array:
    """Pallas implementation of DiceLoss.forward (returns a scalar).

    num_slices=1 is best on single-TensorCore chips (v5e/v6e); use
    num_slices=2 on v7x so the 'parallel' grid axis shards across both cores.
    """
    x = inputs.reshape(-1)   # metadata-only reshape
    t = targets.reshape(-1)
    n = x.shape[0]

    full_rows, rem = divmod(n, _LANE)
    rows = full_rows + (1 if rem else 0)
    if rem:
        # TODO(synk): this <128-lane pad still materializes a full XLA copy of
        # both inputs; a truly zero-copy ragged path needs a 1-D BlockSpec or
        # manual-DMA variant.  Padding x with -1e30 (sigmoid -> 0) and t with 0
        # makes every padded lane contribute exactly zero, so the kernel needs
        # no per-lane mask at all.
        pad = _LANE - rem
        x = jnp.pad(x, (0, pad), constant_values=-1e30)
        t = jnp.pad(t, (0, pad), constant_values=0)

    x2 = x.reshape(rows, _LANE)   # free: metadata-only reshape
    t2 = t.reshape(rows, _LANE)

    # Block row count: multiple of 8, capped at the (rounded-up) row count.
    block_rows = max(8, (int(block_rows) // 8) * 8)
    rows_rounded = ((rows + 7) // 8) * 8
    block_rows = min(block_rows, rows_rounded)

    total_blocks = pl.cdiv(rows, block_rows)
    num_slices = max(1, min(int(num_slices), total_blocks))
    steps_per_slice = pl.cdiv(total_blocks, num_slices)
    last_block = total_blocks - 1
    even_split = (num_slices * steps_per_slice == total_blocks)

    # Row mask needed only when grid coverage exceeds the actual row count
    # (partial last block and/or clamped duplicate blocks on uneven splits).
    # Correctness of partial/duplicate blocks depends on this coupling.
    needs_mask = (num_slices * steps_per_slice * block_rows != rows)

    if even_split:
        def in_index(c, k):
            return (c * steps_per_slice + k, 0)
    else:
        def in_index(c, k):
            # Clamp so an uneven slice split never issues a fully-OOB block
            # DMA; the kernel row mask zeroes the duplicate's contribution.
            return (jnp.minimum(c * steps_per_slice + k, last_block), 0)

    out_sds = jax.ShapeDtypeStruct((num_slices * 8, _LANE), jnp.float32)

    # Explicit VMEM budget: 2 inputs x 2 pipeline buffers + slack.
    in_itemsize = x2.dtype.itemsize + t2.dtype.itemsize
    block_bytes = block_rows * _LANE * in_itemsize
    vmem_limit = int(min(100 * 1024 * 1024, 2 * block_bytes + (8 << 20)))

    cost = pl.CostEstimate(
        flops=6 * n,
        transcendentals=n,
        bytes_accessed=n * in_itemsize + 2 * num_slices * 8 * _LANE * 4,
    )

    inter_out, denom_out = pl.pallas_call(
        functools.partial(_dice_kernel,
                          block_rows=block_rows,
                          steps_per_slice=steps_per_slice,
                          rows=rows,
                          needs_mask=needs_mask),
        out_shape=(out_sds, out_sds),
        grid_spec=pltpu.PrefetchScalarGridSpec(
            num_scalar_prefetch=0,
            grid=(num_slices, steps_per_slice),
            in_specs=[
                pl.BlockSpec((block_rows, _LANE), in_index),
                pl.BlockSpec((block_rows, _LANE), in_index),
            ],
            out_specs=[
                pl.BlockSpec((8, _LANE), lambda c, k: (c, 0)),
                pl.BlockSpec((8, _LANE), lambda c, k: (c, 0)),
            ],
        ),
        compiler_params=pltpu.CompilerParams(
            dimension_semantics=("parallel", "arbitrary"),
            vmem_limit_bytes=vmem_limit),
        cost_estimate=cost,
    )(x2, t2)

    # Tiny final reduction + dice formula in plain JAX (negligible cost).
    inter = jnp.sum(inter_out)
    denom = jnp.sum(denom_out)
    smooth = jnp.float32(smooth)
    dice = (jnp.float32(2.0) * inter + smooth) / (denom + smooth)
    return jnp.float32(1.0) - dice


def dice_loss_ref(inputs, targets, smooth: float = 1.0):
    """Pure-JAX reference mirroring the PyTorch module."""
    s = jax.nn.sigmoid(inputs.astype(jnp.float32)).reshape(-1)
    t = targets.astype(jnp.float32).reshape(-1)
    inter = jnp.sum(s * t)
    dice = (2.0 * inter + smooth) / (jnp.sum(s) + jnp.sum(t) + smooth)
    return 1.0 - dice


if __name__ == "__main__":
    key = jax.random.PRNGKey(0)
    k1, k2, k3, k4, k5, k6 = jax.random.split(key, 6)

    # 1) Segmentation-style shape: batch=2, channels=4, spatial=16x16 (aligned,
    #    no-mask fast path, single block).
    x = jax.random.normal(k1, (2, 4, 16, 16), dtype=jnp.float32)
    tgt = (jax.random.uniform(k2, (2, 4, 16, 16)) > 0.5).astype(jnp.float32)
    loss = jax.block_until_ready(dice_loss(x, tgt, smooth=1.0))
    ref = dice_loss_ref(x, tgt, smooth=1.0)
    assert jnp.allclose(loss, ref, atol=1e-5, rtol=1e-5), (loss, ref)

    # 2) Ragged shape: exercises the -1e30 tail pad + row-mask path.
    x2 = jax.random.normal(k3, (3, 5, 7, 11), dtype=jnp.float32)
    t2 = (jax.random.uniform(k4, (3, 5, 7, 11)) > 0.5).astype(jnp.float32)
    loss2 = jax.block_until_ready(dice_loss(x2, t2, smooth=1.0))
    ref2 = dice_loss_ref(x2, t2, smooth=1.0)
    assert jnp.allclose(loss2, ref2, atol=1e-5, rtol=1e-5), (loss2, ref2)

    # 3) 2*4*32*32 = 8192 elems -> 64 rows: exercises the two-stage reduction,
    #    and (re-run with small blocks / 2 slices) the multi-step accumulator
    #    + even slice-split paths.
    x3 = jax.random.normal(k5, (2, 4, 32, 32), dtype=jnp.float32)
    t3 = (jax.random.uniform(k6, (2, 4, 32, 32)) > 0.5).astype(jnp.float32)
    ref3 = dice_loss_ref(x3, t3, smooth=1.0)
    loss3 = jax.block_until_ready(dice_loss(x3, t3, smooth=1.0))
    assert jnp.allclose(loss3, ref3, atol=1e-5, rtol=1e-5), (loss3, ref3)
    loss3b = jax.block_until_ready(
        dice_loss(x3, t3, smooth=1.0, block_rows=8, num_slices=2))
    assert jnp.allclose(loss3b, ref3, atol=1e-5, rtol=1e-5), (loss3b, ref3)

    # 4) bf16 logits (native-dtype streaming; kernel upcasts to f32).
    xb = x.astype(jnp.bfloat16)
    loss4 = jax.block_until_ready(dice_loss(xb, tgt, smooth=1.0))
    ref4 = dice_loss_ref(xb, tgt, smooth=1.0)
    assert jnp.allclose(loss4, ref4, atol=1e-5, rtol=1e-5), (loss4, ref4)

    print("KERNEL_OK")
</pallas_src>

<mosaic_0001>
module attributes {stable_mosaic.version = 11 : i64} {
  func.func @_dice_kernel(%arg0: i32, %arg1: i32, %arg2: memref<16x128xf32, #tpu.memory_space<vmem>>, %arg3: memref<16x128xf32, #tpu.memory_space<vmem>>, %arg4: memref<8x128xf32, #tpu.memory_space<vmem>>, %arg5: memref<8x128xf32, #tpu.memory_space<vmem>>) attributes {dimension_semantics = [#tpu.dimension_semantics<parallel>, #tpu.dimension_semantics<arbitrary>], iteration_bounds = array<i64: 1, 1>, scalar_prefetch = 0 : i64, scratch_operands = 0 : i64, tpu.core_type = #tpu.core_type<tc>, window_params = [{transform_indices = @transform_0, window_bounds = array<i64: 16, 128>}, {transform_indices = @transform_1, window_bounds = array<i64: 16, 128>}, {transform_indices = @transform_2, window_bounds = array<i64: 8, 128>}, {transform_indices = @transform_3, window_bounds = array<i64: 8, 128>}]} {
    %c0 = arith.constant 0 : index
    %c0_0 = arith.constant 0 : index
    %0 = vector.load %arg2[%c0, %c0_0] : memref<16x128xf32, #tpu.memory_space<vmem>>, vector<16x128xf32>
    %c0_1 = arith.constant 0 : index
    %c0_2 = arith.constant 0 : index
    %1 = vector.load %arg3[%c0_1, %c0_2] : memref<16x128xf32, #tpu.memory_space<vmem>>, vector<16x128xf32>
    %cst = arith.constant 5.000000e-01 : f32
    %2 = vector.broadcast %cst : f32 to vector<16x128xf32>
    %3 = arith.mulf %2, %0 : vector<16x128xf32>
    %4 = math.tanh %3 : vector<16x128xf32>
    %cst_3 = arith.constant 1.000000e+00 : f32
    %5 = vector.broadcast %cst_3 : f32 to vector<16x128xf32>
    %6 = arith.addf %4, %5 : vector<16x128xf32>
    %cst_4 = arith.constant 5.000000e-01 : f32
    %7 = vector.broadcast %cst_4 : f32 to vector<16x128xf32>
    %8 = arith.mulf %7, %6 : vector<16x128xf32>
    %9 = arith.mulf %8, %1 : vector<16x128xf32>
    %10 = arith.addf %8, %1 : vector<16x128xf32>
    %11 = vector.shape_cast %9 : vector<16x128xf32> to vector<2x8x128xf32>
    %cst_5 = arith.constant dense<0.000000e+00> : vector<8x128xf32>
    %12 = vector.multi_reduction <add>, %11, %cst_5 [0] : vector<2x8x128xf32> to vector<8x128xf32>
    %13 = vector.shape_cast %10 : vector<16x128xf32> to vector<2x8x128xf32>
    %cst_6 = arith.constant dense<0.000000e+00> : vector<8x128xf32>
    %14 = vector.multi_reduction <add>, %13, %cst_6 [0] : vector<2x8x128xf32> to vector<8x128xf32>
    %c0_i32 = arith.constant 0 : i32
    %15 = arith.cmpi eq, %arg1, %c0_i32 : i32
    %16 = arith.extui %15 : i1 to i32
    %c0_i32_7 = arith.constant 0 : i32
    %17 = arith.cmpi ne, %16, %c0_i32_7 : i32
    scf.if %17 {
      %cst_16 = arith.constant 0.000000e+00 : f32
      %24 = vector.broadcast %cst_16 : f32 to vector<8x128xf32>
      %c0_17 = arith.constant 0 : index
      %c0_18 = arith.constant 0 : index
      %25 = vector.load %arg4[%c0_17, %c0_18] : memref<8x128xf32, #tpu.memory_space<vmem>>, vector<8x128xf32>
      tpu.vector_store %arg4[%c0_17, %c0_18], %24 {strides = array<i32>} : memref<8x128xf32, #tpu.memory_space<vmem>>, vector<8x128xf32>,
      %cst_19 = arith.constant 0.000000e+00 : f32
      %26 = vector.broadcast %cst_19 : f32 to vector<8x128xf32>
      %c0_20 = arith.constant 0 : index
      %c0_21 = arith.constant 0 : index
      %27 = vector.load %arg5[%c0_20, %c0_21] : memref<8x128xf32, #tpu.memory_space<vmem>>, vector<8x128xf32>
      tpu.vector_store %arg5[%c0_20, %c0_21], %26 {strides = array<i32>} : memref<8x128xf32, #tpu.memory_space<vmem>>, vector<8x128xf32>,
    } else {
    }
    %c0_8 = arith.constant 0 : index
    %c0_9 = arith.constant 0 : index
    %18 = vector.load %arg4[%c0_8, %c0_9] : memref<8x128xf32, #tpu.memory_space<vmem>>, vector<8x128xf32>
    %19 = arith.addf %18, %12 : vector<8x128xf32>
    %c0_10 = arith.constant 0 : index
    %c0_11 = arith.constant 0 : index
    %20 = vector.load %arg4[%c0_10, %c0_11] : memref<8x128xf32, #tpu.memory_space<vmem>>, vector<8x128xf32>
    tpu.vector_store %arg4[%c0_10, %c0_11], %19 {strides = array<i32>} : memref<8x128xf32, #tpu.memory_space<vmem>>, vector<8x128xf32>,
    %c0_12 = arith.constant 0 : index
    %c0_13 = arith.constant 0 : index
    %21 = vector.load %arg5[%c0_12, %c0_13] : memref<8x128xf32, #tpu.memory_space<vmem>>, vector<8x128xf32>
    %22 = arith.addf %21, %14 : vector<8x128xf32>
    %c0_14 = arith.constant 0 : index
    %c0_15 = arith.constant 0 : index
    %23 = vector.load %arg5[%c0_14, %c0_15] : memref<8x128xf32, #tpu.memory_space<vmem>>, vector<8x128xf32>
    tpu.vector_store %arg5[%c0_14, %c0_15], %22 {strides = array<i32>} : memref<8x128xf32, #tpu.memory_space<vmem>>, vector<8x128xf32>,
    return
  }
  func.func @transform_0(%arg0: i32, %arg1: i32) -> (i32, i32) {
    %c1_i32 = arith.constant 1 : i32
    %0 = arith.muli %arg0, %c1_i32 : i32
    %1 = arith.addi %0, %arg1 : i32
    %c0_i32 = arith.constant 0 : i32
    %c0_i32_0 = arith.constant 0 : i32
    return %1, %c0_i32 : i32, i32
  }
  func.func @transform_1(%arg0: i32, %arg1: i32) -> (i32, i32) {
    %c1_i32 = arith.constant 1 : i32
    %0 = arith.muli %arg0, %c1_i32 : i32
    %1 = arith.addi %0, %arg1 : i32
    %c0_i32 = arith.constant 0 : i32
    %c0_i32_0 = arith.constant 0 : i32
    return %1, %c0_i32 : i32, i32
  }
  func.func @transform_2(%arg0: i32, %arg1: i32) -> (i32, i32) {
    %c0_i32 = arith.constant 0 : i32
    %c0_i32_0 = arith.constant 0 : i32
    return %arg0, %c0_i32 : i32, i32
  }
  func.func @transform_3(%arg0: i32, %arg1: i32) -> (i32, i32) {
    %c0_i32 = arith.constant 0 : i32
    %c0_i32_0 = arith.constant 0 : i32
    return %arg0, %c0_i32 : i32, i32
  }
}

</mosaic_0001>

<llo_original>
// kernel: tpu_custom_call.1
$region0: #{tpu_custom_call.1}
  #allocation0 [shape = 'u32[]', space=smem, size = 0x4, offset = 0x4, fixed_abs, tag = 'smem constant byte address 0x4 - core index']
  #allocation1 [shape = 'u32[144,128]{1,0:T(1,128)}', space=vmem, size = 0x12000, scoped, tag = 'internal scratch']
  %s0 = inlined_call_operand.hbm [shape: f32[16,128], index: 0, kind: input, shape index: {}]
  %s1 = inlined_call_operand.hbm [shape: f32[16,128], index: 1, kind: input, shape index: {}]
  %s2 = inlined_call_operand.hbm [shape: f32[8,128], index: 2, kind: output, shape index: {0}]
  %s3 = inlined_call_operand.hbm [shape: f32[8,128], index: 3, kind: output, shape index: {1}]
  %4 = xla_tuple %s2, %s3
  %s5 = sld [smem:[#allocation0]]
  $region38: #{tpu_custom_call.1} parent=0
    _
  %s7 = ssub.s32 1, %s5
  %s8 = scalar_select 0, %s7, %s5
  $region1: #{tpu_custom_call.1} parent=0
    #allocation2 [shape = 'u8[8192]{0}', space=vmem, size = 0x2000, scoped, tag = 'input window, operand 0, single buffered']
    #allocation3 [shape = 's32[1]{0}', space=sflag, size = 0x4, scoped, tag = 'scoped memory for tpu_custom_call.1']
    #allocation4 [shape = 's32[1]{0}', space=sflag, size = 0x4, scoped, tag = 'scoped memory for tpu_custom_call.1']
    #allocation5 [shape = 'u8[8192]{0}', space=vmem, size = 0x2000, scoped, tag = 'input window, operand 1, single buffered']
    #allocation6 [shape = 's32[1]{0}', space=sflag, size = 0x4, scoped, tag = 'scoped memory for tpu_custom_call.1']
    #allocation7 [shape = 'u8[4096]{0}', space=vmem, size = 0x1000, scoped, tag = 'output window, operand 0, single buffered']
    #allocation8 [shape = 'u8[4096]{0}', space=vmem, size = 0x1000, scoped, tag = 'output window, operand 1, single buffered']
    #allocation9 [shape = 's32[1]{0}', space=sflag, size = 0x4, scoped, tag = 'scoped memory for tpu_custom_call.1']
    %9 = vsyncpa [#allocation3], 0
    %10 = vsyncpa [#allocation6], 0
    %11 = vsyncpa [#allocation4], 0
    %12 = vsyncpa [#allocation9], 0
    // Predicated region
    $region2: #{tpu_custom_call.1} parent=1 // pred_check
      _
    $region3: #{tpu_custom_call.1} parent=1 // pred_check_branch
      %14 = sbr.rel (0) target = $region5
    $region4: #{tpu_custom_call.1} parent=1 // pred_region
      %s15 = sadd.s32 0, 0
      %s16 = smul.u32 2, %s15
      %s18 = ssub.s32 256, 256
      %19 = vsyncadd [#allocation3], %s18
      %s20 = smul.addr %s16, 128
      %s21 = scalar_lea.hbm %s0, %s20
      %s22 = sshll.u32 [#allocation2], 4
      %s23 = int_to_ptr.vmem [resolvable:$true] %s22
      %28 = dma.hbm_to_vmem [thread:$0]  %s21, 256, %s23, [#allocation3], 128, 128, 8
    $region5: #{tpu_custom_call.1} parent=1 // pred_fallthru
      _
    // Predicated region
    $region6: #{tpu_custom_call.1} parent=1 // pred_check
      _
    $region7: #{tpu_custom_call.1} parent=1 // pred_check_branch
      %30 = sbr.rel (0) target = $region9
    $region8: #{tpu_custom_call.1} parent=1 // pred_region
      %s31 = sadd.s32 0, 0
      %s32 = smul.u32 2, %s31
      %s34 = ssub.s32 256, 256
      %35 = vsyncadd [#allocation6], %s34
      %s36 = smul.addr %s32, 128
      %s37 = scalar_lea.hbm %s1, %s36
      %s38 = sshll.u32 [#allocation5], 4
      %s39 = int_to_ptr.vmem [resolvable:$true] %s38
      %44 = dma.hbm_to_vmem [thread:$0]  %s37, 256, %s39, [#allocation6], 128, 128, 8
    $region9: #{tpu_custom_call.1} parent=1 // pred_fallthru
      _
    // Predicated region
    $region10: #{tpu_custom_call.1} parent=1 // pred_check
      _
    $region11: #{tpu_custom_call.1} parent=1 // pred_check_branch
      %46 = sbr.rel (0) target = $region13
    $region12: #{tpu_custom_call.1} parent=1 // pred_region
      %47 = dma.done [#allocation3], 256
    $region13: #{tpu_custom_call.1} parent=1 // pred_fallthru
      _
    // Predicated region
    $region14: #{tpu_custom_call.1} parent=1 // pred_check
      _
    $region15: #{tpu_custom_call.1} parent=1 // pred_check_branch
      %49 = sbr.rel (0) target = $region17
    $region16: #{tpu_custom_call.1} parent=1 // pred_region
      %50 = dma.done [#allocation6], 256
    $region17: #{tpu_custom_call.1} parent=1 // pred_fallthru
      _
    %s51 = sadd.s32 0, 0
    %s52 = smul.u32 2, %s51
    %s53 = sadd.s32 0, 0
    %s54 = smul.u32 2, %s53
    %v55 = vld [vmem:[#allocation2] sm:$0xff]
    %v56 = vld [vmem:[#allocation2 + $0x8] sm:$0xff]
    %v57 = vld [vmem:[#allocation5] sm:$0xff]
    %v58 = vld [vmem:[#allocation5 + $0x8] sm:$0xff]
    %v59 = vmul.f32 %v55, 0.5
    %v60 = vmul.f32 %v56, 0.5
    %v61 = vtanh.pop %v59
    %v62 = vtanh.pop %v60
    %v63 = vadd.f32 %v61, 1.0
    %v64 = vadd.f32 %v62, 1.0
    %v65 = vmul.f32 %v63, 0.5
    %v66 = vmul.f32 %v64, 0.5
    %v67 = vmul.f32 %v65, %v57
    %v68 = vmul.f32 %v66, %v58
    %v69 = vadd.f32 %v65, %v57
    %v70 = vadd.f32 %v66, %v58
    %v71 = vadd.f32 %v67, %v68
    %v72 = vadd.f32 %v69, %v70
    %p73 = scmp.eq.s32.totalorder 0, 0
    // Predicated region
    $region18: #{tpu_custom_call.1} parent=1 // pred_check
      %p74 = pneg %p73
    $region19: #{tpu_custom_call.1} parent=1 // pred_check_branch
      %76 = sbr.rel (%p74) target = $region21
    $region20: #{tpu_custom_call.1} parent=1 // pred_region
      %77 = vst [vmem:[#allocation7] sm:$0xff] 0.0
      %78 = vst [vmem:[#allocation8] sm:$0xff] 0.0
    $region21: #{tpu_custom_call.1} parent=1 // pred_fallthru
      _
    %v79 = vld [vmem:[#allocation7] sm:$0xff]
    %v80 = vadd.f32 %v79, %v71
    %81 = vst [vmem:[#allocation7] sm:$0xff] %v80
    %v82 = vld [vmem:[#allocation8] sm:$0xff]
    %v83 = vadd.f32 %v82, %v72
    %84 = vst [vmem:[#allocation8] sm:$0xff] %v83
    // Predicated region
    $region22: #{tpu_custom_call.1} parent=1 // pred_check
      _
    $region23: #{tpu_custom_call.1} parent=1 // pred_check_branch
      %86 = sbr.rel (0) target = $region25
    $region24: #{tpu_custom_call.1} parent=1 // pred_region
      %s88 = ssub.s32 128, 128
      %89 = vsyncadd [#allocation4], %s88
      %s91 = sshll.u32 [#allocation7], 4
      %s92 = int_to_ptr.vmem [resolvable:$true] %s91
      %94 = dma.vmem_to_hbm [thread:$0]  %s92, 128, %s2, [#allocation4]
    $region25: #{tpu_custom_call.1} parent=1 // pred_fallthru
      _
    // Predicated region
    $region26: #{tpu_custom_call.1} parent=1 // pred_check
      _
    $region27: #{tpu_custom_call.1} parent=1 // pred_check_branch
      %96 = sbr.rel (0) target = $region29
    $region28: #{tpu_custom_call.1} parent=1 // pred_region
      %s98 = ssub.s32 128, 128
      %99 = vsyncadd [#allocation9], %s98
      %s101 = sshll.u32 [#allocation8], 4
      %s102 = int_to_ptr.vmem [resolvable:$true] %s101
      %104 = dma.vmem_to_hbm [thread:$0]  %s102, 128, %s3, [#allocation9]
    $region29: #{tpu_custom_call.1} parent=1 // pred_fallthru
      _
    // Predicated region
    $region30: #{tpu_custom_call.1} parent=1 // pred_check
      _
    $region31: #{tpu_custom_call.1} parent=1 // pred_check_branch
      %106 = sbr.rel (0) target = $region33
    $region32: #{tpu_custom_call.1} parent=1 // pred_region
      %107 = dma.done [#allocation4], 128
    $region33: #{tpu_custom_call.1} parent=1 // pred_fallthru
      _
    // Predicated region
    $region34: #{tpu_custom_call.1} parent=1 // pred_check
      _
    $region35: #{tpu_custom_call.1} parent=1 // pred_check_branch
      %109 = sbr.rel (0) target = $region37
    $region36: #{tpu_custom_call.1} parent=1 // pred_region
      %110 = dma.done [#allocation9], 128
    $region37: #{tpu_custom_call.1} parent=1 // pred_fallthru
      _
    %111 = vsyncpa [#allocation3], 1
    %112 = vsyncpa [#allocation6], 1
    %113 = vsyncpa [#allocation4], 1
    %114 = vsyncpa [#allocation9], 1

</llo_original>
